<compile_context>
chip_gen: v7x
topology: tpu7x:2x2x1
jax: 0.10.0
libtpu: 0.0.40
codegen_flags: <defaults>
</compile_context>

<pallas_src>
import functools

import jax
import jax.numpy as jnp
from jax.experimental import pallas as pl
from jax.experimental.pallas import tpu as pltpu


_TARGET_BLOCK_BYTES = 4 << 20  # ~4 MiB nominal per input block


def _cdiv(a, b):
    return (a + b - 1) // b


def _round_up(x, m):
    return _cdiv(x, m) * m


@functools.lru_cache(maxsize=1)
def _hw_params():
    """Best-effort (physical VMEM bytes, TensorCores per device); safe fallbacks."""
    vmem = 64 << 20  # conservative: v7x has the smallest physical VMEM per core
    cores = 1
    try:
        info = pltpu.get_tpu_info()
    except Exception:
        info = None
    if info is not None:
        try:
            v = int(getattr(info, "vmem_capacity_bytes"))
            if v > 0:
                vmem = v
        except Exception:
            pass
        for name in ("num_cores", "core_count", "tensorcore_count", "num_tensorcores"):
            try:
                c = int(getattr(info, name))
                if c > 0:
                    cores = c
                    break
            except Exception:
                pass
    return vmem, cores


def _elementwise_loss(d, loss_type):
    if loss_type == "l1":
        return jnp.abs(d)
    if loss_type == "l2":
        return d * d
    if loss_type == "l1_smooth":  # torch.nn.SmoothL1Loss, beta = 1.0
        ad = jnp.abs(d)
        return jnp.where(ad < 1.0, 0.5 * d * d, ad - 0.5)
    raise ValueError(f"unknown loss type {loss_type}")


def _fold_factor(R, D):
    """Smallest k folding k rows into lanes so the minor dim is 128-dense."""
    if D % 128 == 0:
        return 1
    for k in (2, 4, 8, 16):
        if (k * D) % 128 == 0 and R % k == 0:
            return k
    return 1


# --------------------------- column-sum streaming kernel ---------------------------
def _make_col_sum_kernel(loss_type, tile_rows, steps_per_chunk, n_rows, needs_mask):
    """Accumulates per-column loss sums into a resident (1, 8, D) f32 block."""

    def kernel(pred_ref, gt_ref, out_ref):
        c = pl.program_id(0)
        s = pl.program_id(1)

        @pl.when(s == 0)
        def _():
            out_ref[...] = jnp.zeros_like(out_ref)

        p = pred_ref[...].astype(jnp.float32)
        g = gt_ref[...].astype(jnp.float32)
        e = _elementwise_loss(p - g, loss_type)

        if needs_mask:
            # Column-vector (tile_rows, 1) mask broadcast over lanes: only one
            # select per element. Mask is applied BEFORE the sublane-pack sum so
            # Pallas-padded garbage rows (incl. NaN/Inf) are discarded.
            row0 = (c * steps_per_chunk + s) * tile_rows
            rows = row0 + jax.lax.broadcasted_iota(jnp.int32, (tile_rows, 1), 0)
            e = jnp.where(rows < n_rows, e, 0.0)

        d = e.shape[-1]
        # Group rows into sublane packs of 8 and add across packs: pure VPU adds,
        # no per-step cross-lane reduce, no per-step scalar read-modify-write.
        partial = e.reshape(tile_rows // 8, 8, d).sum(axis=0)
        out_ref[...] += partial[None, :, :]

    return kernel


@functools.partial(jax.jit, static_argnames=("loss_type", "max_tile_rows", "force_chunks"))
def _col_loss_sums(pred2d, gt2d, loss_type, max_tile_rows=None, force_chunks=None):
    """Per-column sum of the elementwise loss over a 2-D (rows, feat) pair."""
    R, D = pred2d.shape
    itemsize = jnp.dtype(pred2d.dtype).itemsize

    # Lane folding (free row-major reshape): same HBM bytes, full 128-lane vregs,
    # ~half the VMEM footprint when D < 128, lane-dense output stores.
    k = _fold_factor(R, D)
    if k > 1:
        pred2d = pred2d.reshape(R // k, k * D)
        gt2d = gt2d.reshape(R // k, k * D)
    Rf, Df = pred2d.shape

    row_align = 8 * max(1, 4 // itemsize)  # 8 for f32, 16 for bf16 (packed sublanes)
    padded_feat = _round_up(Df, 128)       # lane padding in VMEM
    padded_row_bytes = padded_feat * itemsize
    nominal_row_bytes = Df * itemsize

    phys_vmem, num_cores = _hw_params()
    budget = (phys_vmem * 5) // 8          # headroom for 2 inputs x 2 pipeline buffers

    tile_rows = max(
        row_align,
        (_TARGET_BLOCK_BYTES // max(1, nominal_row_bytes)) // row_align * row_align,
    )
    max_rows_vmem = max(
        row_align,
        (budget // (4 * max(1, padded_row_bytes))) // row_align * row_align,
    )
    tile_rows = min(tile_rows, max_rows_vmem)
    if max_tile_rows is not None:
        tile_rows = min(tile_rows, max(row_align, max_tile_rows // row_align * row_align))
    tile_rows = min(tile_rows, _round_up(max(Rf, 1), row_align))
    if tile_rows >= Rf and Rf % 8 == 0:
        tile_rows = Rf  # exact single tile: no mask, no padded-row reads

    num_tiles = _cdiv(Rf, tile_rows)

    # Chunk axis (one chunk per TensorCore) only when it divides the tile count
    # exactly -> no overshoot steps, no redundant HBM re-reads, no index clamp.
    num_chunks = 1
    if force_chunks is not None:
        if num_tiles >= force_chunks and num_tiles % force_chunks == 0:
            num_chunks = force_chunks
    elif num_cores > 1 and num_tiles >= 2 * num_cores and num_tiles % num_cores == 0:
        num_chunks = num_cores
    steps = num_tiles // num_chunks
    assert num_chunks * steps == num_tiles

    needs_mask = (Rf % tile_rows) != 0  # only a genuine partial last tile

    out_bytes = num_chunks * 8 * padded_feat * 4
    needed = 4 * tile_rows * padded_row_bytes + 2 * out_bytes + (1 << 20)
    vmem_limit = int(min(phys_vmem - (8 << 20), max(needed + (4 << 20), 32 << 20)))

    out = pl.pallas_call(
        _make_col_sum_kernel(loss_type, tile_rows, steps, Rf, needs_mask),
        out_shape=jax.ShapeDtypeStruct((num_chunks, 8, Df), jnp.float32),
        grid_spec=pltpu.PrefetchScalarGridSpec(
            num_scalar_prefetch=0,
            grid=(num_chunks, steps),
            in_specs=[
                pl.BlockSpec((tile_rows, Df), lambda c, s: (c * steps + s, 0)),
                pl.BlockSpec((tile_rows, Df), lambda c, s: (c * steps + s, 0)),
            ],
            out_specs=pl.BlockSpec((1, 8, Df), lambda c, s: (c, 0, 0)),
        ),
        compiler_params=pltpu.CompilerParams(
            # NOTE: on v7x, pltpu.CORE_PARALLEL on the chunk axis may be needed to
            # guarantee both TensorCores run; "parallel" is kept for portability.
            dimension_semantics=("parallel", "arbitrary"),
            vmem_limit_bytes=vmem_limit,
        ),
        cost_estimate=pl.CostEstimate(
            flops=int(6 * Rf * Df),
            transcendentals=0,
            bytes_accessed=int(2 * Rf * Df * itemsize + num_chunks * 8 * Df * 4),
        ),
    )(pred2d, gt2d)

    col = out.sum(axis=(0, 1))  # (Df,) — tiny final reduce in JAX glue
    if k > 1:
        col = col.reshape(k, D).sum(axis=0)  # recover per-original-column sums
    return col


# --------------------------- fused velocity loss (face mode) ---------------------------
def _make_vel_kernel(loss_type):
    """Fused temporal-difference loss; each block holds bt whole sequences."""

    def kernel(pred_ref, gt_ref, out_ref):
        p = pred_ref[...]  # (bt, T, D), input dtype (matches torch vel arithmetic)
        g = gt_ref[...]
        pv = p[:, 1:, :] - p[:, :-1, :]
        gv = g[:, 1:, :] - g[:, :-1, :]
        # The zeroed first frame contributes loss(0)=0, so it is simply omitted
        # here; the mean denominator in the glue still counts it.
        l = _elementwise_loss(pv.astype(jnp.float32) - gv.astype(jnp.float32), loss_type)
        out_ref[...] = jnp.sum(jnp.sum(l, axis=1), axis=0, keepdims=True)[None]

    return kernel


@functools.partial(jax.jit, static_argnames=("loss_type",))
def _vel_loss_face(pred, gt, loss_type):
    """Face-mode forward_vel with the temporal diff fused into the kernel."""
    B, T, D = pred.shape
    if T < 2:
        return jnp.float32(0.0)
    itemsize = jnp.dtype(pred.dtype).itemsize
    phys_vmem, _ = _hw_params()
    budget = (phys_vmem * 5) // 8
    padded_seq_bytes = T * _round_up(D, 128) * itemsize

    if 4 * padded_seq_bytes > budget:
        # One sequence does not fit VMEM: fall back to the unfused path
        # (materialized velocities + the streaming column-sum kernel).
        vel_pred = jnp.concatenate(
            [jnp.zeros_like(pred[:, :1, :]), pred[:, 1:, :] - pred[:, :-1, :]], axis=1)
        vel_gt = jnp.concatenate(
            [jnp.zeros_like(gt[:, :1, :]), gt[:, 1:, :] - gt[:, :-1, :]], axis=1)
        col = _col_loss_sums(vel_pred.reshape(-1, D), vel_gt.reshape(-1, D), loss_type)
        return col.sum() / jnp.float32(B * T * D)

    # Batch several whole sequences per block (bt must divide B), up to ~4 MiB
    # nominal and within the (2 inputs x 2 buffers) padded VMEM budget.
    bt = 1
    for cand in range(2, B + 1):
        if B % cand:
            continue
        if (cand * T * D * itemsize <= _TARGET_BLOCK_BYTES
                and 4 * cand * padded_seq_bytes <= budget):
            bt = cand

    needed = 4 * bt * padded_seq_bytes + (1 << 20)
    vmem_limit = int(min(phys_vmem - (8 << 20), max(needed + (4 << 20), 32 << 20)))

    out = pl.pallas_call(
        _make_vel_kernel(loss_type),
        out_shape=jax.ShapeDtypeStruct((B // bt, 1, D), jnp.float32),
        grid_spec=pltpu.PrefetchScalarGridSpec(
            num_scalar_prefetch=0,
            grid=(B // bt,),
            in_specs=[
                pl.BlockSpec((bt, T, D), lambda b: (b, 0, 0)),
                pl.BlockSpec((bt, T, D), lambda b: (b, 0, 0)),
            ],
            out_specs=pl.BlockSpec((1, 1, D), lambda b: (b, 0, 0)),
        ),
        compiler_params=pltpu.CompilerParams(
            dimension_semantics=("parallel",),
            vmem_limit_bytes=vmem_limit,
        ),
        cost_estimate=pl.CostEstimate(
            flops=int(8 * B * T * D),
            transcendentals=0,
            bytes_accessed=int(2 * B * T * D * itemsize + (B // bt) * D * 4),
        ),
    )(pred, gt)
    return out.sum() / jnp.float32(B * T * D)


# ----------------------------------- module -----------------------------------
class ReConsLossPallas:
    """JAX/Pallas port of utils/losses.py::ReConsLoss (forward + forward_vel)."""

    def __init__(self, recons_loss, nb_joints, pose_alpha):
        assert recons_loss in ("l1", "l2", "l1_smooth")
        self.loss_type = recons_loss
        self.nb_joints = nb_joints
        if nb_joints is not None:
            self.motion_dim = (nb_joints - 1) * 12 + 4 + 3 + 4
        else:
            self.jaw_alpha = 1.0
            self.pose_alpha = pose_alpha

    def _col_sums(self, pred, gt):
        D = pred.shape[-1]
        p2 = pred.reshape(-1, D)
        g2 = gt.reshape(-1, D)
        return _col_loss_sums(p2, g2, self.loss_type), p2.shape[0]

    def _forward_from_cols(self, col_sums, R):
        if self.nb_joints is not None:
            md = self.motion_dim
            return col_sums[:md].sum() / jnp.float32(R * md)
        exp_loss = col_sums[:50].sum() / jnp.float32(R * 50)
        rot_loss = (col_sums[50:53].sum() / jnp.float32(R * 3)) * self.pose_alpha
        jaw_loss = self.jaw_alpha * (col_sums[53:56].sum() / jnp.float32(R * 3))
        return exp_loss + rot_loss + jaw_loss

    def _forward_vel_from_cols(self, col_sums, R):
        lo, hi = 4, (self.nb_joints - 1) * 3 + 4
        return col_sums[lo:hi].sum() / jnp.float32(R * (hi - lo))

    def forward(self, motion_pred, motion_gt):
        col_sums, R = self._col_sums(motion_pred, motion_gt)
        return self._forward_from_cols(col_sums, R)

    def forward_vel(self, motion_pred, motion_gt):
        if self.nb_joints is None:
            return _vel_loss_face(motion_pred, motion_gt, self.loss_type)
        col_sums, R = self._col_sums(motion_pred, motion_gt)
        return self._forward_vel_from_cols(col_sums, R)

    def forward_both(self, motion_pred, motion_gt):
        """forward + forward_vel; body mode uses a single streaming pass."""
        if self.nb_joints is not None:
            col_sums, R = self._col_sums(motion_pred, motion_gt)
            return (self._forward_from_cols(col_sums, R),
                    self._forward_vel_from_cols(col_sums, R))
        return (self.forward(motion_pred, motion_gt),
                self.forward_vel(motion_pred, motion_gt))


# ----------------------- pure-JAX reference for checking -----------------------
def _ref_mean(p, g, loss_type):
    d = p.astype(jnp.float32) - g.astype(jnp.float32)
    return jnp.mean(_elementwise_loss(d, loss_type))


def _ref_forward(module, pred, gt):
    if module.nb_joints is not None:
        md = module.motion_dim
        return _ref_mean(pred[..., :md], gt[..., :md], module.loss_type)
    return (
        _ref_mean(pred[:, :, :50], gt[:, :, :50], module.loss_type)
        + _ref_mean(pred[:, :, 50:53], gt[:, :, 50:53], module.loss_type) * module.pose_alpha
        + module.jaw_alpha * _ref_mean(pred[:, :, 53:56], gt[:, :, 53:56], module.loss_type)
    )


def _ref_forward_vel(module, pred, gt):
    if module.nb_joints is None:
        vp = jnp.concatenate(
            [jnp.zeros_like(pred[:, :1, :]), pred[:, 1:, :] - pred[:, :-1, :]], axis=1)
        vg = jnp.concatenate(
            [jnp.zeros_like(gt[:, :1, :]), gt[:, 1:, :] - gt[:, :-1, :]], axis=1)
        return _ref_mean(vp, vg, module.loss_type)
    lo, hi = 4, (module.nb_joints - 1) * 3 + 4
    return _ref_mean(pred[..., lo:hi], gt[..., lo:hi], module.loss_type)


if __name__ == "__main__":
    key = jax.random.PRNGKey(0)
    ks = jax.random.split(key, 8)

    # --- face mode (nb_joints=None): feature dim >= 56 ---
    B, T, D_face = 2, 8, 64
    pred_face = jax.random.normal(ks[0], (B, T, D_face), dtype=jnp.float32)
    gt_face = jax.random.normal(ks[1], (B, T, D_face), dtype=jnp.float32)

    # --- body mode (nb_joints=5): motion_dim = 4*12 + 11 = 59 ---
    nb_joints = 5
    pred_body = jax.random.normal(ks[2], (B, T, 64), dtype=jnp.float32)
    gt_body = jax.random.normal(ks[3], (B, T, 64), dtype=jnp.float32)

    ok = True
    for lt in ("l1", "l2", "l1_smooth"):
        mod_face = ReConsLossPallas(lt, nb_joints=None, pose_alpha=10.0)
        out = mod_face.forward(pred_face, gt_face)
        jax.block_until_ready(out)
        ok &= bool(jnp.allclose(out, _ref_forward(mod_face, pred_face, gt_face),
                                rtol=1e-5, atol=1e-5))
        outv = mod_face.forward_vel(pred_face, gt_face)  # fused diff kernel
        jax.block_until_ready(outv)
        ok &= bool(jnp.allclose(outv, _ref_forward_vel(mod_face, pred_face, gt_face),
                                rtol=1e-5, atol=1e-5))

        mod_body = ReConsLossPallas(lt, nb_joints=nb_joints, pose_alpha=None)
        outb, outvb = mod_body.forward_both(pred_body, gt_body)  # one streaming pass
        jax.block_until_ready((outb, outvb))
        ok &= bool(jnp.allclose(outb, _ref_forward(mod_body, pred_body, gt_body),
                                rtol=1e-5, atol=1e-5))
        ok &= bool(jnp.allclose(outvb, _ref_forward_vel(mod_body, pred_body, gt_body),
                                rtol=1e-5, atol=1e-5))

    # bf16 inputs: lane-fold + in-kernel f32 accumulation; fused vel path too.
    mod_bf16 = ReConsLossPallas("l2", nb_joints=None, pose_alpha=10.0)
    pf16, gf16 = pred_face.astype(jnp.bfloat16), gt_face.astype(jnp.bfloat16)
    out_bf16 = mod_bf16.forward(pf16, gf16)
    jax.block_until_ready(out_bf16)
    ok &= bool(jnp.allclose(out_bf16, _ref_forward(mod_bf16, pf16, gf16),
                            rtol=1e-4, atol=1e-4))
    outv_bf16 = mod_bf16.forward_vel(pf16, gf16)
    jax.block_until_ready(outv_bf16)
    ok &= bool(jnp.allclose(outv_bf16, _ref_forward_vel(mod_bf16, pf16, gf16),
                            rtol=5e-3, atol=1e-3))

    # Multi-tile + genuine partial last tile path (D=59 -> no fold, row mask used).
    p_big = jax.random.normal(ks[4], (70, 59), dtype=jnp.float32)
    g_big = jax.random.normal(ks[5], (70, 59), dtype=jnp.float32)
    cs = _col_loss_sums(p_big, g_big, "l1_smooth", max_tile_rows=8)
    jax.block_until_ready(cs)
    ref_cs = _elementwise_loss(p_big - g_big, "l1_smooth").sum(axis=0)
    ok &= bool(jnp.allclose(cs, ref_cs, rtol=1e-5, atol=1e-5))

    # Chunked (multi-TensorCore style) path, forced for coverage: 8 tiles, 2 chunks.
    p_ch = jax.random.normal(ks[6], (64, 59), dtype=jnp.float32)
    g_ch = jax.random.normal(ks[7], (64, 59), dtype=jnp.float32)
    cs2 = _col_loss_sums(p_ch, g_ch, "l1", max_tile_rows=8, force_chunks=2)
    jax.block_until_ready(cs2)
    ref_cs2 = _elementwise_loss(p_ch - g_ch, "l1").sum(axis=0)
    ok &= bool(jnp.allclose(cs2, ref_cs2, rtol=1e-5, atol=1e-5))

    print("KERNEL_OK" if ok else "KERNEL_MISMATCH")
</pallas_src>

<mosaic_0001>
module attributes {stable_mosaic.version = 11 : i64} {
  func.func @kernel(%arg0: i32, %arg1: i32, %arg2: memref<8x128xf32, #tpu.memory_space<vmem>>, %arg3: memref<8x128xf32, #tpu.memory_space<vmem>>, %arg4: memref<1x8x128xf32, #tpu.memory_space<vmem>>) attributes {dimension_semantics = [#tpu.dimension_semantics<parallel>, #tpu.dimension_semantics<arbitrary>], iteration_bounds = array<i64: 1, 1>, scalar_prefetch = 0 : i64, scratch_operands = 0 : i64, tpu.core_type = #tpu.core_type<tc>, window_params = [{transform_indices = @transform_0, window_bounds = array<i64: 8, 128>}, {transform_indices = @transform_1, window_bounds = array<i64: 8, 128>}, {transform_indices = @transform_2, window_bounds = array<i64: 1, 8, 128>}]} {
    %c0_i32 = arith.constant 0 : i32
    %0 = arith.cmpi eq, %arg1, %c0_i32 : i32
    %1 = arith.extui %0 : i1 to i32
    %c0_i32_0 = arith.constant 0 : i32
    %2 = arith.cmpi ne, %1, %c0_i32_0 : i32
    scf.if %2 {
      %cst_10 = arith.constant 0.000000e+00 : f32
      %13 = vector.broadcast %cst_10 : f32 to vector<1x8x128xf32>
      %c0_11 = arith.constant 0 : index
      %c0_12 = arith.constant 0 : index
      %c0_13 = arith.constant 0 : index
      %14 = vector.load %arg4[%c0_11, %c0_12, %c0_13] : memref<1x8x128xf32, #tpu.memory_space<vmem>>, vector<1x8x128xf32>
      tpu.vector_store %arg4[%c0_11, %c0_12, %c0_13], %13 {strides = array<i32>} : memref<1x8x128xf32, #tpu.memory_space<vmem>>, vector<1x8x128xf32>,
    } else {
    }
    %c0 = arith.constant 0 : index
    %c0_1 = arith.constant 0 : index
    %3 = vector.load %arg2[%c0, %c0_1] : memref<8x128xf32, #tpu.memory_space<vmem>>, vector<8x128xf32>
    %c0_2 = arith.constant 0 : index
    %c0_3 = arith.constant 0 : index
    %4 = vector.load %arg3[%c0_2, %c0_3] : memref<8x128xf32, #tpu.memory_space<vmem>>, vector<8x128xf32>
    %5 = arith.subf %3, %4 : vector<8x128xf32>
    %6 = math.absf %5 : vector<8x128xf32>
    %7 = vector.shape_cast %6 : vector<8x128xf32> to vector<1x8x128xf32>
    %cst = arith.constant dense<0.000000e+00> : vector<8x128xf32>
    %8 = vector.multi_reduction <add>, %7, %cst [0] : vector<1x8x128xf32> to vector<8x128xf32>
    %c0_4 = arith.constant 0 : index
    %c0_5 = arith.constant 0 : index
    %c0_6 = arith.constant 0 : index
    %9 = vector.load %arg4[%c0_4, %c0_5, %c0_6] : memref<1x8x128xf32, #tpu.memory_space<vmem>>, vector<1x8x128xf32>
    %10 = vector.shape_cast %8 : vector<8x128xf32> to vector<1x8x128xf32>
    %11 = arith.addf %9, %10 : vector<1x8x128xf32>
    %c0_7 = arith.constant 0 : index
    %c0_8 = arith.constant 0 : index
    %c0_9 = arith.constant 0 : index
    %12 = vector.load %arg4[%c0_7, %c0_8, %c0_9] : memref<1x8x128xf32, #tpu.memory_space<vmem>>, vector<1x8x128xf32>
    tpu.vector_store %arg4[%c0_7, %c0_8, %c0_9], %11 {strides = array<i32>} : memref<1x8x128xf32, #tpu.memory_space<vmem>>, vector<1x8x128xf32>,
    return
  }
  func.func @transform_0(%arg0: i32, %arg1: i32) -> (i32, i32) {
    %c1_i32 = arith.constant 1 : i32
    %0 = arith.muli %arg0, %c1_i32 : i32
    %1 = arith.addi %0, %arg1 : i32
    %c0_i32 = arith.constant 0 : i32
    %c0_i32_0 = arith.constant 0 : i32
    return %1, %c0_i32 : i32, i32
  }
  func.func @transform_1(%arg0: i32, %arg1: i32) -> (i32, i32) {
    %c1_i32 = arith.constant 1 : i32
    %0 = arith.muli %arg0, %c1_i32 : i32
    %1 = arith.addi %0, %arg1 : i32
    %c0_i32 = arith.constant 0 : i32
    %c0_i32_0 = arith.constant 0 : i32
    return %1, %c0_i32 : i32, i32
  }
  func.func @transform_2(%arg0: i32, %arg1: i32) -> (i32, i32, i32) {
    %c0_i32 = arith.constant 0 : i32
    %c0_i32_0 = arith.constant 0 : i32
    %c0_i32_1 = arith.constant 0 : i32
    return %arg0, %c0_i32, %c0_i32_0 : i32, i32, i32
  }
}

</mosaic_0001>

<llo_original>
// kernel: _col_loss_sums.1
$region0: #{_col_loss_sums.1}
  #allocation0 [shape = 'u32[]', space=smem, size = 0x4, offset = 0x4, fixed_abs, tag = 'smem constant byte address 0x4 - core index']
  #allocation1 [shape = 'u32[144,128]{1,0:T(1,128)}', space=vmem, size = 0x12000, scoped, tag = 'internal scratch']
  %s0 = inlined_call_operand.vmem [shape: f32[8,128], index: 0, kind: input, shape index: {}]
  %s1 = inlined_call_operand.vmem [shape: f32[8,128], index: 1, kind: input, shape index: {}]
  %s2 = inlined_call_operand.vmem [shape: f32[1,8,128], index: 2, kind: output, shape index: {}]
  %s3 = sld [smem:[#allocation0]]
  $region22: #{_col_loss_sums.1} parent=0
    _
  %s5 = ssub.s32 1, %s3
  %s6 = scalar_select 0, %s5, %s3
  // Predicated region
  $region2: #{_col_loss_sums.1} parent=0 // pred_check
    _
  $region3: #{_col_loss_sums.1} parent=0 // pred_check_branch
    %8 = sbr.rel (0) target = $region5
  $region4: #{_col_loss_sums.1} parent=0 // pred_region
    %s9 = sadd.s32 0, 0
    %p10 = scmp.lt.s32.totalorder %s9, 0
    %s11 = scalar_select %p10, %s9, 0
    %s12 = smul.addr %s11, 8
    %s13 = scalar_lea.vmem %s0, %s12
    %s14 = sadd.s32 0, 0
  $region5: #{_col_loss_sums.1} parent=0 // pred_fallthru
    _
  // Predicated region
  $region6: #{_col_loss_sums.1} parent=0 // pred_check
    _
  $region7: #{_col_loss_sums.1} parent=0 // pred_check_branch
    %16 = sbr.rel (0) target = $region9
  $region8: #{_col_loss_sums.1} parent=0 // pred_region
    %s17 = sadd.s32 0, 0
    %p18 = scmp.lt.s32.totalorder %s17, 0
    %s19 = scalar_select %p18, %s17, 0
    %s20 = smul.addr %s19, 8
    %s21 = scalar_lea.vmem %s1, %s20
    %s22 = sadd.s32 0, 0
  $region9: #{_col_loss_sums.1} parent=0 // pred_fallthru
    _
  %s23 = sadd.s32 0, 0
  %p24 = scmp.lt.s32.totalorder %s23, 0
  %s25 = scalar_select %p24, %s23, 0
  %s26 = smul.addr %s25, 8
  %s27 = scalar_lea.vmem %s0, %s26
  %s28 = sadd.s32 0, 0
  %p29 = scmp.lt.s32.totalorder %s28, 0
  %s30 = scalar_select %p29, %s28, 0
  %s31 = smul.addr %s30, 8
  %s32 = scalar_lea.vmem %s1, %s31
  %s33 = sadd.s32 0, 0
  %p34 = scmp.lt.s32.totalorder %s33, 0
  %s35 = scalar_select %p34, %s33, 0
  %s36 = smul.addr %s35, 8
  %s37 = scalar_lea.vmem %s0, %s36
  %s38 = sadd.s32 0, 0
  %s39 = sadd.s32 0, 0
  %p40 = scmp.lt.s32.totalorder %s39, 0
  %s41 = scalar_select %p40, %s39, 0
  %s42 = smul.addr %s41, 8
  %s43 = scalar_lea.vmem %s1, %s42
  %s44 = sadd.s32 0, 0
  %p45 = scmp.eq.s32.totalorder 0, 0
  // Predicated region
  $region10: #{_col_loss_sums.1} parent=0 // pred_check
    %p46 = pneg %p45
  $region11: #{_col_loss_sums.1} parent=0 // pred_check_branch
    %48 = sbr.rel (%p46) target = $region13
  $region12: #{_col_loss_sums.1} parent=0 // pred_region
    %49 = vst [vmem:[%s2] sm:$0xff] 0.0
  $region13: #{_col_loss_sums.1} parent=0 // pred_fallthru
    _
  %v50 = vld [vmem:[%s37] sm:$0xff]
  %v51 = vld [vmem:[%s43] sm:$0xff]
  %v52 = vsub.f32 %v50, %v51
  %v53 = vand.u32 2147483647, %v52
  %v54 = vadd.f32 %v53, 0.0
  %v55 = vld [vmem:[%s2] sm:$0xff]
  %v56 = vadd.f32 %v55, %v54
  %57 = vst [vmem:[%s2] sm:$0xff] %v56
  // Predicated region
  $region14: #{_col_loss_sums.1} parent=0 // pred_check
    _
  $region15: #{_col_loss_sums.1} parent=0 // pred_check_branch
    %59 = sbr.rel (0) target = $region17
  $region16: #{_col_loss_sums.1} parent=0 // pred_region
    _
  $region17: #{_col_loss_sums.1} parent=0 // pred_fallthru
    _
  // Predicated region
  $region18: #{_col_loss_sums.1} parent=0 // pred_check
    _
  $region19: #{_col_loss_sums.1} parent=0 // pred_check_branch
    %61 = sbr.rel (0) target = $region21
  $region20: #{_col_loss_sums.1} parent=0 // pred_region
    _
  $region21: #{_col_loss_sums.1} parent=0 // pred_fallthru
    _

</llo_original>
